<compile_context>
chip_gen: v7x
topology: tpu7x:2x2x1
jax: 0.10.0
libtpu: 0.0.40
codegen_flags: <defaults>
</compile_context>

<pallas_src>
import functools

import jax
import jax.numpy as jnp
from jax import lax
from jax.experimental import pallas as pl
from jax.experimental.pallas import tpu as pltpu

HBAR = 1.0
MASS = 1.0
LAMBDA_1 = 5.0
LAMBDA_2 = 1.0   # defined in __init__ but unused in forward (matches reference)
LAMBDA_3 = 5.0
LAMBDA_4 = 1.0
EPS = 1e-6       # epsilon used by the reference for clamping / denominator


def losses_kernel(data_ref, wc_ref, out_ref, *, chunk, n_chunks, n_hblocks):
    """One grid step: an (8, chunk*n_chunks) slab of packed per-point data.

    data rows: 0..2 = x, y, z ; 3,4 = psi_pred re/im ; 5,6 = psi_true re/im ;
               7 = trapezoid weight 0.5*(r_next - r_prev).
    wc columns: 0..2 = W1 columns ; 3 = b1 ; 4,5 = W2 rows * rowsum(W1^2) ;
               6,7 = padding.
    Writes lane-wise partial sums (7 quantities x `chunk` lanes) to its own
    output block -> no cross-step state, grid axis is fully parallel.
    """
    out_ref[...] = jnp.zeros_like(out_ref)
    wc = wc_ref[...]                                   # tiny [H_pad, 8]
    coeff = jnp.float32(-(HBAR ** 2) / (2.0 * MASS))

    def chunk_body(c, carry):
        base = pl.multiple_of(c * chunk, chunk)
        xs = data_ref[0:1, pl.ds(base, chunk)]
        ys = data_ref[1:2, pl.ds(base, chunk)]
        zs = data_ref[2:3, pl.ds(base, chunk)]
        pr = data_ref[3:4, pl.ds(base, chunk)]
        pi = data_ref[4:5, pl.ds(base, chunk)]
        tr = data_ref[5:6, pl.ds(base, chunk)]
        ti = data_ref[6:7, pl.ds(base, chunk)]
        tw = data_ref[7:8, pl.ds(base, chunk)]

        s = xs * xs + ys * ys + zs * zs
        sc = jnp.maximum(s, EPS)                       # == r_safe ** 2
        V = -lax.rsqrt(sc)                             # == -1 / r_safe (~1 ulp)

        # Hoisted sublane broadcasts, reused by every hidden block below.
        xb = jnp.broadcast_to(xs, (8, chunk))
        yb = jnp.broadcast_to(ys, (8, chunk))
        zb = jnp.broadcast_to(zs, (8, chunk))

        # Analytic Laplacian of the stand-in tanh MLP; hidden dim processed in
        # 8-sublane blocks to keep live vregs small at chunk=512.
        # TODO(synk): WfcNN is undefined in the reference; synthetic MLP + exact
        # analytic eps->0 limit of the finite-difference Laplacian.
        lap_r = jnp.zeros((1, chunk), jnp.float32)
        lap_i = jnp.zeros((1, chunk), jnp.float32)
        for hb in range(n_hblocks):
            wb = wc[hb * 8:(hb + 1) * 8, :]            # static slice (free)
            pre = (wb[:, 0:1] * xb + wb[:, 1:2] * yb + wb[:, 2:3] * zb
                   + wb[:, 3:4])
            h = jnp.tanh(pre)
            curv = (-2.0 * h) * (1.0 - h * h)          # tanh''(pre)
            lap_r = lap_r + jnp.sum(wb[:, 4:5] * curv, axis=0, keepdims=True)
            # TODO(synk): laplacian_imag undefined in reference; use channel 1.
            lap_i = lap_i + jnp.sum(wb[:, 5:6] * curv, axis=0, keepdims=True)

        h_r = coeff * lap_r + V * pr
        h_i = coeff * lap_i + V * pi

        mag = pr * pr + pi * pi
        quantities = (
            (h_r * pr + h_i * pi) * tw,        # 0: trapz numerator
            mag * tw,                          # 1: trapz denominator
            mag * sc * tw,                     # 2: normalization integral
            h_r * h_r + h_i * h_i,             # 3: sum(H^2)
            h_r * tr + h_i * ti,               # 4: sum(H * psi_true)
            tr * tr + ti * ti,                 # 5: sum(psi_true^2)
            (pr - tr) ** 2 + (pi - ti) ** 2,   # 6: supervised residual
        )
        for k, q in enumerate(quantities):     # lane-wise accumulate (row 7 unused)
            out_ref[k:k + 1, :] = out_ref[k:k + 1, :] + q
        return carry

    lax.fori_loop(0, n_chunks, chunk_body, 0)


def _choose_tiling(n, max_chunks_per_block=16):
    chunk = None
    for c in (512, 256, 128):
        if n % c == 0:
            chunk = c
            break
    if chunk is None:
        raise ValueError("number of sample points must be a multiple of 128")
    total_chunks = n // chunk
    n_chunks = 1
    for k in range(min(max_chunks_per_block, total_chunks), 0, -1):
        if total_chunks % k == 0:
            n_chunks = k
            break
    return chunk, n_chunks, total_chunks // n_chunks


@jax.jit
def losses_forward(psi_pred, x, y, z, psi_true_real, psi_true_imag, mlp_params):
    """psi_pred: [N, 2]; x, y, z, psi_true_*: [N].  Returns (total, loss_dict)."""
    n = x.shape[0]
    chunk, n_chunks, num_blocks = _choose_tiling(n)
    block = chunk * n_chunks
    f32 = jnp.float32

    x = x.astype(f32); y = y.astype(f32); z = z.astype(f32)
    pr = psi_pred[:, 0].astype(f32)
    pi = psi_pred[:, 1].astype(f32)
    tr = psi_true_real.astype(f32)
    ti = psi_true_imag.astype(f32)

    # r_safe exactly as the reference (sqrt of the clamped radius^2) and the
    # trapezoid weights w_i = 0.5*(r[i+1] - r[i-1]) (one-sided endpoints):
    # torch.trapz(y, r_safe) == sum_i y_i * w_i, so the kernel needs no
    # adjacent-pair logic or cross-tile carry at all.
    r = jnp.sqrt(jnp.maximum(x * x + y * y + z * z, EPS))
    r_prev = jnp.concatenate([r[:1], r[:-1]])
    r_next = jnp.concatenate([r[1:], r[-1:]])
    w = 0.5 * (r_next - r_prev)

    # Pack all per-point streams into one sublane-dense [8, N] array.
    # TODO(synk): callers that already hold data packed as [8, N] can skip this
    # extra XLA packing pass over HBM.
    data = jnp.stack([x, y, z, pr, pi, tr, ti, w], axis=0)

    w1, b1, w2, _b2 = mlp_params        # b2 drops out of the (affine) Laplacian
    w1 = w1.astype(f32)
    b1 = b1.reshape(-1, 1).astype(f32)
    w2 = w2.astype(f32)
    hidden = w1.shape[0]
    h_pad = ((hidden + 7) // 8) * 8     # pad hidden to 8-sublane blocks

    # Hoisted weight-derived constants: rowsum(W1^2) folded into the W2 rows,
    # everything packed into a single [H_pad, 8] block (fetched once).
    s1 = jnp.sum(w1 * w1, axis=1, keepdims=True)
    wc = jnp.zeros((h_pad, 8), f32)
    wc = wc.at[:hidden, 0:3].set(w1)
    wc = wc.at[:hidden, 3:4].set(b1)
    wc = wc.at[:hidden, 4:5].set(jnp.transpose(w2[0:1, :]) * s1)
    wc = wc.at[:hidden, 5:6].set(jnp.transpose(w2[1:2, :]) * s1)

    # Right-sized VMEM budget: double-buffered data slab + weights + out block.
    vmem_bytes = 4 * (2 * 8 * block + 2 * h_pad * 8 + 2 * 8 * chunk) + (2 << 20)

    partials = pl.pallas_call(
        functools.partial(losses_kernel, chunk=chunk, n_chunks=n_chunks,
                          n_hblocks=h_pad // 8),
        out_shape=jax.ShapeDtypeStruct((num_blocks * 8, chunk), f32),
        grid_spec=pltpu.PrefetchScalarGridSpec(
            num_scalar_prefetch=0,
            grid=(num_blocks,),
            in_specs=[
                pl.BlockSpec((8, block), lambda i: (0, i)),     # packed points
                pl.BlockSpec((h_pad, 8), lambda i: (0, 0)),     # packed weights
            ],
            out_specs=pl.BlockSpec((8, chunk), lambda i: (i, 0)),
        ),
        compiler_params=pltpu.CompilerParams(
            dimension_semantics=("parallel",),     # no cross-step state
            vmem_limit_bytes=int(vmem_bytes)),
    )(data, wc)

    # Single cross-lane / cross-block reduction + scalar finalize in JAX.
    sums = jnp.sum(partials.reshape(num_blocks, 8, chunk), axis=(0, 2))
    t_num, t_den, t_norm, s_hh, s_ht, s_tt, s_sup = (sums[k] for k in range(7))

    inv_n = 1.0 / n
    energy = t_num / (t_den + EPS)
    # TODO(synk): the single-pass expansion sum(H^2) - 2E sum(H t) + E^2 sum(t^2)
    # can cancel catastrophically when H ~= E*t; an exact fix needs a 2nd sweep.
    schrodinger_loss = (s_hh - 2.0 * energy * s_ht + energy * energy * s_tt) * inv_n
    normalization_loss = (t_norm - 1.0) ** 2
    supervised_loss = s_sup * inv_n
    total_loss = (LAMBDA_1 * schrodinger_loss
                  + LAMBDA_3 * normalization_loss
                  + LAMBDA_4 * supervised_loss)
    loss_dict = {
        "schrodinger_loss": schrodinger_loss,
        "normalization_loss": normalization_loss,
        "supervised_loss": supervised_loss,
    }
    return total_loss, loss_dict


def init_wfcnn_params(hidden=32, key=None):
    """Deterministic synthetic weights for the stand-in WfcNN MLP (3 -> H -> 2)."""
    if key is None:
        key = jax.random.PRNGKey(42)
    k1, k2, k3, k4 = jax.random.split(key, 4)
    w1 = 0.5 * jax.random.normal(k1, (hidden, 3), dtype=jnp.float32)
    b1 = 0.1 * jax.random.normal(k2, (hidden, 1), dtype=jnp.float32)
    w2 = 0.5 * jax.random.normal(k3, (2, hidden), dtype=jnp.float32)
    b2 = 0.1 * jax.random.normal(k4, (2, 1), dtype=jnp.float32)
    return (w1, b1, w2, b2)


if __name__ == "__main__":
    N = 16384       # sample points: 2 grid blocks of 16 x 512-lane chunks
    HIDDEN = 32

    key = jax.random.PRNGKey(0)
    kp, kx, ky, kz, ktr, kti, kw = jax.random.split(key, 7)
    psi_pred = 0.3 * jax.random.normal(kp, (N, 2), dtype=jnp.float32)
    x = 2.0 * jax.random.normal(kx, (N,), dtype=jnp.float32)
    y = 2.0 * jax.random.normal(ky, (N,), dtype=jnp.float32)
    z = 2.0 * jax.random.normal(kz, (N,), dtype=jnp.float32)
    psi_true_real = 0.3 * jax.random.normal(ktr, (N,), dtype=jnp.float32)
    psi_true_imag = 0.3 * jax.random.normal(kti, (N,), dtype=jnp.float32)

    params = init_wfcnn_params(HIDDEN, kw)

    total, loss_dict = losses_forward(
        psi_pred, x, y, z, psi_true_real, psi_true_imag, params)
    jax.block_until_ready(total)
    for v in loss_dict.values():
        jax.block_until_ready(v)
    print("KERNEL_OK")
</pallas_src>

<mosaic_0001>
module attributes {stable_mosaic.version = 11 : i64} {
  func.func @losses_kernel(%arg0: i32, %arg1: memref<8x8192xf32, #tpu.memory_space<vmem>>, %arg2: memref<32x8xf32, #tpu.memory_space<vmem>>, %arg3: memref<8x512xf32, #tpu.memory_space<vmem>>) attributes {dimension_semantics = [#tpu.dimension_semantics<parallel>], iteration_bounds = array<i64: 2>, scalar_prefetch = 0 : i64, scratch_operands = 0 : i64, tpu.core_type = #tpu.core_type<tc>, window_params = [{transform_indices = @transform_0, window_bounds = array<i64: 8, 8192>}, {pipeline_mode = #tpu.pipeline_mode<synchronous>, transform_indices = @transform_1, window_bounds = array<i64: 32, 8>}, {transform_indices = @transform_2, window_bounds = array<i64: 8, 512>}]} {
    %cst = arith.constant 0.000000e+00 : f32
    %0 = vector.broadcast %cst : f32 to vector<8x512xf32>
    %c0 = arith.constant 0 : index
    %c0_0 = arith.constant 0 : index
    %1 = vector.load %arg3[%c0, %c0_0] : memref<8x512xf32, #tpu.memory_space<vmem>>, vector<8x512xf32>
    tpu.vector_store %arg3[%c0, %c0_0], %0 {strides = array<i32>} : memref<8x512xf32, #tpu.memory_space<vmem>>, vector<8x512xf32>,
    %c0_1 = arith.constant 0 : index
    %c0_2 = arith.constant 0 : index
    %2 = vector.load %arg2[%c0_1, %c0_2] : memref<32x8xf32, #tpu.memory_space<vmem>>, vector<32x8xf32>
    %cst_3 = arith.constant -5.000000e-01 : f32
    %c0_i32 = arith.constant 0 : i32
    %c16_i32 = arith.constant 16 : i32
    %3 = arith.addi %c0_i32, %c16_i32 : i32
    %c1_i32 = arith.constant 1 : i32
    scf.for %arg4 = %c0_i32 to %3 step %c1_i32  : i32 {
      %c512_i32 = arith.constant 512 : i32
      %4 = arith.muli %arg4, %c512_i32 : i32
      %5 = tpu.assume_multiple %4, 512 : i32
      %c0_5 = arith.constant 0 : index
      %6 = arith.index_cast %5 : i32 to index
      %7 = vector.load %arg1[%c0_5, %6] : memref<8x8192xf32, #tpu.memory_space<vmem>>, vector<1x512xf32>
      %c1 = arith.constant 1 : index
      %8 = arith.index_cast %5 : i32 to index
      %9 = vector.load %arg1[%c1, %8] : memref<8x8192xf32, #tpu.memory_space<vmem>>, vector<1x512xf32>
      %c2 = arith.constant 2 : index
      %10 = arith.index_cast %5 : i32 to index
      %11 = vector.load %arg1[%c2, %10] : memref<8x8192xf32, #tpu.memory_space<vmem>>, vector<1x512xf32>
      %c3 = arith.constant 3 : index
      %12 = arith.index_cast %5 : i32 to index
      %13 = vector.load %arg1[%c3, %12] : memref<8x8192xf32, #tpu.memory_space<vmem>>, vector<1x512xf32>
      %c4 = arith.constant 4 : index
      %14 = arith.index_cast %5 : i32 to index
      %15 = vector.load %arg1[%c4, %14] : memref<8x8192xf32, #tpu.memory_space<vmem>>, vector<1x512xf32>
      %c5 = arith.constant 5 : index
      %16 = arith.index_cast %5 : i32 to index
      %17 = vector.load %arg1[%c5, %16] : memref<8x8192xf32, #tpu.memory_space<vmem>>, vector<1x512xf32>
      %c6 = arith.constant 6 : index
      %18 = arith.index_cast %5 : i32 to index
      %19 = vector.load %arg1[%c6, %18] : memref<8x8192xf32, #tpu.memory_space<vmem>>, vector<1x512xf32>
      %c7 = arith.constant 7 : index
      %20 = arith.index_cast %5 : i32 to index
      %21 = vector.load %arg1[%c7, %20] : memref<8x8192xf32, #tpu.memory_space<vmem>>, vector<1x512xf32>
      %22 = arith.mulf %7, %7 : vector<1x512xf32>
      %23 = arith.mulf %9, %9 : vector<1x512xf32>
      %24 = arith.addf %22, %23 : vector<1x512xf32>
      %25 = arith.mulf %11, %11 : vector<1x512xf32>
      %26 = arith.addf %24, %25 : vector<1x512xf32>
      %cst_6 = arith.constant 9.99999997E-7 : f32
      %27 = vector.broadcast %cst_6 : f32 to vector<1x512xf32>
      %28 = arith.maximumf %26, %27 : vector<1x512xf32>
      %29 = math.rsqrt %28 : vector<1x512xf32>
      %cst_7 = arith.constant 0.000000e+00 : f32
      %30 = vector.broadcast %cst_7 : f32 to vector<1x512xf32>
      %31 = arith.subf %30, %29 : vector<1x512xf32>
      %32 = vector.shape_cast %7 : vector<1x512xf32> to vector<1x512xf32>
      %33 = vector.broadcast %32 : vector<1x512xf32> to vector<8x512xf32>
      %34 = vector.shape_cast %9 : vector<1x512xf32> to vector<1x512xf32>
      %35 = vector.broadcast %34 : vector<1x512xf32> to vector<8x512xf32>
      %36 = vector.shape_cast %11 : vector<1x512xf32> to vector<1x512xf32>
      %37 = vector.broadcast %36 : vector<1x512xf32> to vector<8x512xf32>
      %cst_8 = arith.constant 0.000000e+00 : f32
      %38 = vector.broadcast %cst_8 : f32 to vector<1x512xf32>
      %cst_9 = arith.constant 0.000000e+00 : f32
      %39 = vector.broadcast %cst_9 : f32 to vector<1x512xf32>
      %40 = vector.extract_strided_slice %2 {offsets = [0, 0], sizes = [8, 8], strides = [1, 1]} : vector<32x8xf32> to vector<8x8xf32>
      %41 = vector.extract_strided_slice %40 {offsets = [0, 0], sizes = [8, 1], strides = [1, 1]} : vector<8x8xf32> to vector<8x1xf32>
      %42 = vector.broadcast %41 : vector<8x1xf32> to vector<8x512xf32>
      %43 = arith.mulf %42, %33 : vector<8x512xf32>
      %44 = vector.extract_strided_slice %40 {offsets = [0, 1], sizes = [8, 1], strides = [1, 1]} : vector<8x8xf32> to vector<8x1xf32>
      %45 = vector.broadcast %44 : vector<8x1xf32> to vector<8x512xf32>
      %46 = arith.mulf %45, %35 : vector<8x512xf32>
      %47 = arith.addf %43, %46 : vector<8x512xf32>
      %48 = vector.extract_strided_slice %40 {offsets = [0, 2], sizes = [8, 1], strides = [1, 1]} : vector<8x8xf32> to vector<8x1xf32>
      %49 = vector.broadcast %48 : vector<8x1xf32> to vector<8x512xf32>
      %50 = arith.mulf %49, %37 : vector<8x512xf32>
      %51 = arith.addf %47, %50 : vector<8x512xf32>
      %52 = vector.extract_strided_slice %40 {offsets = [0, 3], sizes = [8, 1], strides = [1, 1]} : vector<8x8xf32> to vector<8x1xf32>
      %53 = vector.broadcast %52 : vector<8x1xf32> to vector<8x512xf32>
      %54 = arith.addf %51, %53 : vector<8x512xf32>
      %55 = math.tanh %54 : vector<8x512xf32>
      %cst_10 = arith.constant -2.000000e+00 : f32
      %56 = vector.broadcast %cst_10 : f32 to vector<8x512xf32>
      %57 = arith.mulf %56, %55 : vector<8x512xf32>
      %58 = arith.mulf %55, %55 : vector<8x512xf32>
      %cst_11 = arith.constant 1.000000e+00 : f32
      %59 = vector.broadcast %cst_11 : f32 to vector<8x512xf32>
      %60 = arith.subf %59, %58 : vector<8x512xf32>
      %61 = arith.mulf %57, %60 : vector<8x512xf32>
      %62 = vector.extract_strided_slice %40 {offsets = [0, 4], sizes = [8, 1], strides = [1, 1]} : vector<8x8xf32> to vector<8x1xf32>
      %63 = vector.broadcast %62 : vector<8x1xf32> to vector<8x512xf32>
      %64 = arith.mulf %63, %61 : vector<8x512xf32>
      %cst_12 = arith.constant dense<0.000000e+00> : vector<512xf32>
      %65 = vector.multi_reduction <add>, %64, %cst_12 [0] : vector<8x512xf32> to vector<512xf32>
      %66 = vector.shape_cast %65 : vector<512xf32> to vector<1x512xf32>
      %67 = arith.addf %38, %66 : vector<1x512xf32>
      %68 = vector.extract_strided_slice %40 {offsets = [0, 5], sizes = [8, 1], strides = [1, 1]} : vector<8x8xf32> to vector<8x1xf32>
      %69 = vector.broadcast %68 : vector<8x1xf32> to vector<8x512xf32>
      %70 = arith.mulf %69, %61 : vector<8x512xf32>
      %cst_13 = arith.constant dense<0.000000e+00> : vector<512xf32>
      %71 = vector.multi_reduction <add>, %70, %cst_13 [0] : vector<8x512xf32> to vector<512xf32>
      %72 = vector.shape_cast %71 : vector<512xf32> to vector<1x512xf32>
      %73 = arith.addf %39, %72 : vector<1x512xf32>
      %74 = vector.extract_strided_slice %2 {offsets = [8, 0], sizes = [8, 8], strides = [1, 1]} : vector<32x8xf32> to vector<8x8xf32>
      %75 = vector.extract_strided_slice %74 {offsets = [0, 0], sizes = [8, 1], strides = [1, 1]} : vector<8x8xf32> to vector<8x1xf32>
      %76 = vector.broadcast %75 : vector<8x1xf32> to vector<8x512xf32>
      %77 = arith.mulf %76, %33 : vector<8x512xf32>
      %78 = vector.extract_strided_slice %74 {offsets = [0, 1], sizes = [8, 1], strides = [1, 1]} : vector<8x8xf32> to vector<8x1xf32>
      %79 = vector.broadcast %78 : vector<8x1xf32> to vector<8x512xf32>
      %80 = arith.mulf %79, %35 : vector<8x512xf32>
      %81 = arith.addf %77, %80 : vector<8x512xf32>
      %82 = vector.extract_strided_slice %74 {offsets = [0, 2], sizes = [8, 1], strides = [1, 1]} : vector<8x8xf32> to vector<8x1xf32>
      %83 = vector.broadcast %82 : vector<8x1xf32> to vector<8x512xf32>
      %84 = arith.mulf %83, %37 : vector<8x512xf32>
      %85 = arith.addf %81, %84 : vector<8x512xf32>
      %86 = vector.extract_strided_slice %74 {offsets = [0, 3], sizes = [8, 1], strides = [1, 1]} : vector<8x8xf32> to vector<8x1xf32>
      %87 = vector.broadcast %86 : vector<8x1xf32> to vector<8x512xf32>
      %88 = arith.addf %85, %87 : vector<8x512xf32>
      %89 = math.tanh %88 : vector<8x512xf32>
      %cst_14 = arith.constant -2.000000e+00 : f32
      %90 = vector.broadcast %cst_14 : f32 to vector<8x512xf32>
      %91 = arith.mulf %90, %89 : vector<8x512xf32>
      %92 = arith.mulf %89, %89 : vector<8x512xf32>
      %cst_15 = arith.constant 1.000000e+00 : f32
      %93 = vector.broadcast %cst_15 : f32 to vector<8x512xf32>
      %94 = arith.subf %93, %92 : vector<8x512xf32>
      %95 = arith.mulf %91, %94 : vector<8x512xf32>
      %96 = vector.extract_strided_slice %74 {offsets = [0, 4], sizes = [8, 1], strides = [1, 1]} : vector<8x8xf32> to vector<8x1xf32>
      %97 = vector.broadcast %96 : vector<8x1xf32> to vector<8x512xf32>
      %98 = arith.mulf %97, %95 : vector<8x512xf32>
      %cst_16 = arith.constant dense<0.000000e+00> : vector<512xf32>
      %99 = vector.multi_reduction <add>, %98, %cst_16 [0] : vector<8x512xf32> to vector<512xf32>
      %100 = vector.shape_cast %99 : vector<512xf32> to vector<1x512xf32>
      %101 = arith.addf %67, %100 : vector<1x512xf32>
      %102 = vector.extract_strided_slice %74 {offsets = [0, 5], sizes = [8, 1], strides = [1, 1]} : vector<8x8xf32> to vector<8x1xf32>
      %103 = vector.broadcast %102 : vector<8x1xf32> to vector<8x512xf32>
      %104 = arith.mulf %103, %95 : vector<8x512xf32>
      %cst_17 = arith.constant dense<0.000000e+00> : vector<512xf32>
      %105 = vector.multi_reduction <add>, %104, %cst_17 [0] : vector<8x512xf32> to vector<512xf32>
      %106 = vector.shape_cast %105 : vector<512xf32> to vector<1x512xf32>
      %107 = arith.addf %73, %106 : vector<1x512xf32>
      %108 = vector.extract_strided_slice %2 {offsets = [16, 0], sizes = [8, 8], strides = [1, 1]} : vector<32x8xf32> to vector<8x8xf32>
      %109 = vector.extract_strided_slice %108 {offsets = [0, 0], sizes = [8, 1], strides = [1, 1]} : vector<8x8xf32> to vector<8x1xf32>
      %110 = vector.broadcast %109 : vector<8x1xf32> to vector<8x512xf32>
      %111 = arith.mulf %110, %33 : vector<8x512xf32>
      %112 = vector.extract_strided_slice %108 {offsets = [0, 1], sizes = [8, 1], strides = [1, 1]} : vector<8x8xf32> to vector<8x1xf32>
      %113 = vector.broadcast %112 : vector<8x1xf32> to vector<8x512xf32>
      %114 = arith.mulf %113, %35 : vector<8x512xf32>
      %115 = arith.addf %111, %114 : vector<8x512xf32>
      %116 = vector.extract_strided_slice %108 {offsets = [0, 2], sizes = [8, 1], strides = [1, 1]} : vector<8x8xf32> to vector<8x1xf32>
      %117 = vector.broadcast %116 : vector<8x1xf32> to vector<8x512xf32>
      %118 = arith.mulf %117, %37 : vector<8x512xf32>
      %119 = arith.addf %115, %118 : vector<8x512xf32>
      %120 = vector.extract_strided_slice %108 {offsets = [0, 3], sizes = [8, 1], strides = [1, 1]} : vector<8x8xf32> to vector<8x1xf32>
      %121 = vector.broadcast %120 : vector<8x1xf32> to vector<8x512xf32>
      %122 = arith.addf %119, %121 : vector<8x512xf32>
      %123 = math.tanh %122 : vector<8x512xf32>
      %cst_18 = arith.constant -2.000000e+00 : f32
      %124 = vector.broadcast %cst_18 : f32 to vector<8x512xf32>
      %125 = arith.mulf %124, %123 : vector<8x512xf32>
      %126 = arith.mulf %123, %123 : vector<8x512xf32>
      %cst_19 = arith.constant 1.000000e+00 : f32
      %127 = vector.broadcast %cst_19 : f32 to vector<8x512xf32>
      %128 = arith.subf %127, %126 : vector<8x512xf32>
      %129 = arith.mulf %125, %128 : vector<8x512xf32>
      %130 = vector.extract_strided_slice %108 {offsets = [0, 4], sizes = [8, 1], strides = [1, 1]} : vector<8x8xf32> to vector<8x1xf32>
      %131 = vector.broadcast %130 : vector<8x1xf32> to vector<8x512xf32>
      %132 = arith.mulf %131, %129 : vector<8x512xf32>
      %cst_20 = arith.constant dense<0.000000e+00> : vector<512xf32>
      %133 = vector.multi_reduction <add>, %132, %cst_20 [0] : vector<8x512xf32> to vector<512xf32>
      %134 = vector.shape_cast %133 : vector<512xf32> to vector<1x512xf32>
      %135 = arith.addf %101, %134 : vector<1x512xf32>
      %136 = vector.extract_strided_slice %108 {offsets = [0, 5], sizes = [8, 1], strides = [1, 1]} : vector<8x8xf32> to vector<8x1xf32>
      %137 = vector.broadcast %136 : vector<8x1xf32> to vector<8x512xf32>
      %138 = arith.mulf %137, %129 : vector<8x512xf32>
      %cst_21 = arith.constant dense<0.000000e+00> : vector<512xf32>
      %139 = vector.multi_reduction <add>, %138, %cst_21 [0] : vector<8x512xf32> to vector<512xf32>
      %140 = vector.shape_cast %139 : vector<512xf32> to vector<1x512xf32>
      %141 = arith.addf %107, %140 : vector<1x512xf32>
      %142 = vector.extract_strided_slice %2 {offsets = [24, 0], sizes = [8, 8], strides = [1, 1]} : vector<32x8xf32> to vector<8x8xf32>
      %143 = vector.extract_strided_slice %142 {offsets = [0, 0], sizes = [8, 1], strides = [1, 1]} : vector<8x8xf32> to vector<8x1xf32>
      %144 = vector.broadcast %143 : vector<8x1xf32> to vector<8x512xf32>
      %145 = arith.mulf %144, %33 : vector<8x512xf32>
      %146 = vector.extract_strided_slice %142 {offsets = [0, 1], sizes = [8, 1], strides = [1, 1]} : vector<8x8xf32> to vector<8x1xf32>
      %147 = vector.broadcast %146 : vector<8x1xf32> to vector<8x512xf32>
      %148 = arith.mulf %147, %35 : vector<8x512xf32>
      %149 = arith.addf %145, %148 : vector<8x512xf32>
      %150 = vector.extract_strided_slice %142 {offsets = [0, 2], sizes = [8, 1], strides = [1, 1]} : vector<8x8xf32> to vector<8x1xf32>
      %151 = vector.broadcast %150 : vector<8x1xf32> to vector<8x512xf32>
      %152 = arith.mulf %151, %37 : vector<8x512xf32>
      %153 = arith.addf %149, %152 : vector<8x512xf32>
      %154 = vector.extract_strided_slice %142 {offsets = [0, 3], sizes = [8, 1], strides = [1, 1]} : vector<8x8xf32> to vector<8x1xf32>
      %155 = vector.broadcast %154 : vector<8x1xf32> to vector<8x512xf32>
      %156 = arith.addf %153, %155 : vector<8x512xf32>
      %157 = math.tanh %156 : vector<8x512xf32>
      %cst_22 = arith.constant -2.000000e+00 : f32
      %158 = vector.broadcast %cst_22 : f32 to vector<8x512xf32>
      %159 = arith.mulf %158, %157 : vector<8x512xf32>
      %160 = arith.mulf %157, %157 : vector<8x512xf32>
      %cst_23 = arith.constant 1.000000e+00 : f32
      %161 = vector.broadcast %cst_23 : f32 to vector<8x512xf32>
      %162 = arith.subf %161, %160 : vector<8x512xf32>
      %163 = arith.mulf %159, %162 : vector<8x512xf32>
      %164 = vector.extract_strided_slice %142 {offsets = [0, 4], sizes = [8, 1], strides = [1, 1]} : vector<8x8xf32> to vector<8x1xf32>
      %165 = vector.broadcast %164 : vector<8x1xf32> to vector<8x512xf32>
      %166 = arith.mulf %165, %163 : vector<8x512xf32>
      %cst_24 = arith.constant dense<0.000000e+00> : vector<512xf32>
      %167 = vector.multi_reduction <add>, %166, %cst_24 [0] : vector<8x512xf32> to vector<512xf32>
      %168 = vector.shape_cast %167 : vector<512xf32> to vector<1x512xf32>
      %169 = arith.addf %135, %168 : vector<1x512xf32>
      %170 = vector.extract_strided_slice %142 {offsets = [0, 5], sizes = [8, 1], strides = [1, 1]} : vector<8x8xf32> to vector<8x1xf32>
      %171 = vector.broadcast %170 : vector<8x1xf32> to vector<8x512xf32>
      %172 = arith.mulf %171, %163 : vector<8x512xf32>
      %cst_25 = arith.constant dense<0.000000e+00> : vector<512xf32>
      %173 = vector.multi_reduction <add>, %172, %cst_25 [0] : vector<8x512xf32> to vector<512xf32>
      %174 = vector.shape_cast %173 : vector<512xf32> to vector<1x512xf32>
      %175 = arith.addf %141, %174 : vector<1x512xf32>
      %176 = vector.broadcast %cst_3 : f32 to vector<1x512xf32>
      %177 = arith.mulf %176, %169 : vector<1x512xf32>
      %178 = arith.mulf %31, %13 : vector<1x512xf32>
      %179 = arith.addf %177, %178 : vector<1x512xf32>
      %180 = vector.broadcast %cst_3 : f32 to vector<1x512xf32>
      %181 = arith.mulf %180, %175 : vector<1x512xf32>
      %182 = arith.mulf %31, %15 : vector<1x512xf32>
      %183 = arith.addf %181, %182 : vector<1x512xf32>
      %184 = arith.mulf %13, %13 : vector<1x512xf32>
      %185 = arith.mulf %15, %15 : vector<1x512xf32>
      %186 = arith.addf %184, %185 : vector<1x512xf32>
      %187 = arith.mulf %179, %13 : vector<1x512xf32>
      %188 = arith.mulf %183, %15 : vector<1x512xf32>
      %189 = arith.addf %187, %188 : vector<1x512xf32>
      %190 = arith.mulf %189, %21 : vector<1x512xf32>
      %191 = arith.mulf %186, %21 : vector<1x512xf32>
      %192 = arith.mulf %186, %28 : vector<1x512xf32>
      %193 = arith.mulf %192, %21 : vector<1x512xf32>
      %194 = arith.mulf %179, %179 : vector<1x512xf32>
      %195 = arith.mulf %183, %183 : vector<1x512xf32>
      %196 = arith.addf %194, %195 : vector<1x512xf32>
      %197 = arith.mulf %179, %17 : vector<1x512xf32>
      %198 = arith.mulf %183, %19 : vector<1x512xf32>
      %199 = arith.addf %197, %198 : vector<1x512xf32>
      %200 = arith.mulf %17, %17 : vector<1x512xf32>
      %201 = arith.mulf %19, %19 : vector<1x512xf32>
      %202 = arith.addf %200, %201 : vector<1x512xf32>
      %203 = arith.subf %13, %17 : vector<1x512xf32>
      %204 = arith.mulf %203, %203 : vector<1x512xf32>
      %205 = arith.subf %15, %19 : vector<1x512xf32>
      %206 = arith.mulf %205, %205 : vector<1x512xf32>
      %207 = arith.addf %204, %206 : vector<1x512xf32>
      %c0_26 = arith.constant 0 : index
      %c0_27 = arith.constant 0 : index
      %208 = vector.load %arg3[%c0_26, %c0_27] : memref<8x512xf32, #tpu.memory_space<vmem>>, vector<1x512xf32>
      %209 = arith.addf %208, %190 : vector<1x512xf32>
      %c0_28 = arith.constant 0 : index
      %c0_29 = arith.constant 0 : index
      %210 = vector.load %arg3[%c0_28, %c0_29] : memref<8x512xf32, #tpu.memory_space<vmem>>, vector<1x512xf32>
      tpu.vector_store %arg3[%c0_28, %c0_29], %209 {strides = array<i32>} : memref<8x512xf32, #tpu.memory_space<vmem>>, vector<1x512xf32>,
      %c1_30 = arith.constant 1 : index
      %c0_31 = arith.constant 0 : index
      %211 = vector.load %arg3[%c1_30, %c0_31] : memref<8x512xf32, #tpu.memory_space<vmem>>, vector<1x512xf32>
      %212 = arith.addf %211, %191 : vector<1x512xf32>
      %c1_32 = arith.constant 1 : index
      %c0_33 = arith.constant 0 : index
      %213 = vector.load %arg3[%c1_32, %c0_33] : memref<8x512xf32, #tpu.memory_space<vmem>>, vector<1x512xf32>
      tpu.vector_store %arg3[%c1_32, %c0_33], %212 {strides = array<i32>} : memref<8x512xf32, #tpu.memory_space<vmem>>, vector<1x512xf32>,
      %c2_34 = arith.constant 2 : index
      %c0_35 = arith.constant 0 : index
      %214 = vector.load %arg3[%c2_34, %c0_35] : memref<8x512xf32, #tpu.memory_space<vmem>>, vector<1x512xf32>
      %215 = arith.addf %214, %193 : vector<1x512xf32>
      %c2_36 = arith.constant 2 : index
      %c0_37 = arith.constant 0 : index
      %216 = vector.load %arg3[%c2_36, %c0_37] : memref<8x512xf32, #tpu.memory_space<vmem>>, vector<1x512xf32>
      tpu.vector_store %arg3[%c2_36, %c0_37], %215 {strides = array<i32>} : memref<8x512xf32, #tpu.memory_space<vmem>>, vector<1x512xf32>,
      %c3_38 = arith.constant 3 : index
      %c0_39 = arith.constant 0 : index
      %217 = vector.load %arg3[%c3_38, %c0_39] : memref<8x512xf32, #tpu.memory_space<vmem>>, vector<1x512xf32>
      %218 = arith.addf %217, %196 : vector<1x512xf32>
      %c3_40 = arith.constant 3 : index
      %c0_41 = arith.constant 0 : index
      %219 = vector.load %arg3[%c3_40, %c0_41] : memref<8x512xf32, #tpu.memory_space<vmem>>, vector<1x512xf32>
      tpu.vector_store %arg3[%c3_40, %c0_41], %218 {strides = array<i32>} : memref<8x512xf32, #tpu.memory_space<vmem>>, vector<1x512xf32>,
      %c4_42 = arith.constant 4 : index
      %c0_43 = arith.constant 0 : index
      %220 = vector.load %arg3[%c4_42, %c0_43] : memref<8x512xf32, #tpu.memory_space<vmem>>, vector<1x512xf32>
      %221 = arith.addf %220, %199 : vector<1x512xf32>
      %c4_44 = arith.constant 4 : index
      %c0_45 = arith.constant 0 : index
      %222 = vector.load %arg3[%c4_44, %c0_45] : memref<8x512xf32, #tpu.memory_space<vmem>>, vector<1x512xf32>
      tpu.vector_store %arg3[%c4_44, %c0_45], %221 {strides = array<i32>} : memref<8x512xf32, #tpu.memory_space<vmem>>, vector<1x512xf32>,
      %c5_46 = arith.constant 5 : index
      %c0_47 = arith.constant 0 : index
      %223 = vector.load %arg3[%c5_46, %c0_47] : memref<8x512xf32, #tpu.memory_space<vmem>>, vector<1x512xf32>
      %224 = arith.addf %223, %202 : vector<1x512xf32>
      %c5_48 = arith.constant 5 : index
      %c0_49 = arith.constant 0 : index
      %225 = vector.load %arg3[%c5_48, %c0_49] : memref<8x512xf32, #tpu.memory_space<vmem>>, vector<1x512xf32>
      tpu.vector_store %arg3[%c5_48, %c0_49], %224 {strides = array<i32>} : memref<8x512xf32, #tpu.memory_space<vmem>>, vector<1x512xf32>,
      %c6_50 = arith.constant 6 : index
      %c0_51 = arith.constant 0 : index
      %226 = vector.load %arg3[%c6_50, %c0_51] : memref<8x512xf32, #tpu.memory_space<vmem>>, vector<1x512xf32>
      %227 = arith.addf %226, %207 : vector<1x512xf32>
      %c6_52 = arith.constant 6 : index
      %c0_53 = arith.constant 0 : index
      %228 = vector.load %arg3[%c6_52, %c0_53] : memref<8x512xf32, #tpu.memory_space<vmem>>, vector<1x512xf32>
      tpu.vector_store %arg3[%c6_52, %c0_53], %227 {strides = array<i32>} : memref<8x512xf32, #tpu.memory_space<vmem>>, vector<1x512xf32>,
    }
    %c16_i32_4 = arith.constant 16 : i32
    return
  }
  func.func @transform_0(%arg0: i32) -> (i32, i32) {
    %c0_i32 = arith.constant 0 : i32
    %c0_i32_0 = arith.constant 0 : i32
    return %c0_i32, %arg0 : i32, i32
  }
  func.func @transform_1(%arg0: i32) -> (i32, i32) {
    %c0_i32 = arith.constant 0 : i32
    %c0_i32_0 = arith.constant 0 : i32
    %c0_i32_1 = arith.constant 0 : i32
    return %c0_i32, %c0_i32_0 : i32, i32
  }
  func.func @transform_2(%arg0: i32) -> (i32, i32) {
    %c0_i32 = arith.constant 0 : i32
    %c0_i32_0 = arith.constant 0 : i32
    return %arg0, %c0_i32 : i32, i32
  }
}

</mosaic_0001>

<llo_original>
// kernel: losses_forward.1
$region0: #{losses_forward.1}
  #allocation0 [shape = 'u32[]', space=smem, size = 0x4, offset = 0x4, fixed_abs, tag = 'smem constant byte address 0x4 - core index']
  #allocation1 [shape = 'u32[144,128]{1,0:T(1,128)}', space=vmem, size = 0x12000, scoped, tag = 'internal scratch']
  %s0 = inlined_call_operand.vmem [shape: f32[8,16384], index: 0, kind: input, shape index: {}]
  %s1 = inlined_call_operand.vmem [shape: f32[32,8], index: 1, kind: input, shape index: {}]
  %s2 = inlined_call_operand.vmem [shape: f32[16,512], index: 2, kind: output, shape index: {}]
  %s3 = sld [smem:[#allocation0]]
  $region48: #{losses_forward.1} parent=0
    _
  %s5 = ssub.s32 1, %s3
  %s6 = scalar_select 0, %s5, %s3
  loop: start=0, step=1, limit=4
  $region2: #{losses_forward.1} parent=0 // loop_pre_header
    _
  $region3: #{losses_forward.1} parent=0 // loop_header
    %s8 = sphi 0, %s12
    %p9 = scmp.ge.s32.totalorder %s8, 4
    %s18 = sphi 0, %s20
    %s21 = sphi 0, %s18
    %s22 = sphi 0, %s21
    %s38 = sphi 0, %s22
    %s42 = sphi 0, %s42
    %s44 = sphi 0, %s42
    %s45 = sphi 0, %s44
    %s59 = sphi 0, %s45
    %s65 = sphi 0, %s67
    %s68 = sphi 0, %s65
    %s69 = sphi 0, %s68
    %s85 = sphi 0, %s69
  $region4: #{losses_forward.1} parent=0 // loop_header_branch
    %11 = sbr.rel (%p9) target = $region8
  $region5: #{losses_forward.1} parent=0 // loop_body
    %s13 = ssub.s32 %s8, 1
    %s14 = ssub.s32 %s8, 2
    %s15 = sadd.s32 %s8, 1
    %s16 = ssub.s32 %s8, %s15
    %p17 = scmp.eq.s32.totalorder %s16, 0
    %s19 = sadd.s32 %s18, 1
    %s20 = scalar_select %p17, %s18, %s19
    %p23 = pneg %p17
    %p24 = scmp.eq.s32.totalorder %s8, 1
    %p25 = por %p23, %p24
    %p26 = scmp.ne.s32.totalorder %s18, %s21
    %p27 = scmp.eq.s32.totalorder %s8, 0
    %p28 = por %p26, %p27
    %p29 = scmp.ne.s32.totalorder %s18, %s21
    %p30 = scmp.eq.s32.totalorder %s13, 1
    %p31 = por %p29, %p30
    %p32 = scmp.ne.s32.totalorder %s21, %s22
    %p33 = scmp.eq.s32.totalorder %s13, 0
    %p34 = por %p32, %p33
    %p35 = scmp.ne.s32.totalorder %s21, %s22
    %p36 = scmp.eq.s32.totalorder %s14, 1
    %p37 = por %p35, %p36
    %p39 = scmp.ne.s32.totalorder %s22, %s38
    %p40 = scmp.eq.s32.totalorder %s14, 0
    %p41 = por %p39, %p40
    %s43 = sadd.s32 %s42, 1
    %p46 = scmp.eq.s32.totalorder %s8, 1
    %p47 = scmp.ne.s32.totalorder %s42, %s44
    %p48 = scmp.eq.s32.totalorder %s8, 0
    %p49 = por %p47, %p48
    %p50 = scmp.ne.s32.totalorder %s42, %s44
    %p51 = scmp.eq.s32.totalorder %s13, 1
    %p52 = por %p50, %p51
    %p53 = scmp.ne.s32.totalorder %s44, %s45
    %p54 = scmp.eq.s32.totalorder %s13, 0
    %p55 = por %p53, %p54
    %p56 = scmp.ne.s32.totalorder %s44, %s45
    %p57 = scmp.eq.s32.totalorder %s14, 1
    %p58 = por %p56, %p57
    %p60 = scmp.ne.s32.totalorder %s45, %s59
    %p61 = scmp.eq.s32.totalorder %s14, 0
    %p62 = por %p60, %p61
    %s63 = ssub.s32 %s8, %s15
    %p64 = scmp.eq.s32.totalorder %s63, 0
    %s66 = sadd.s32 %s65, 1
    %s67 = scalar_select %p64, %s65, %s66
    %p70 = pneg %p64
    %p71 = scmp.eq.s32.totalorder %s8, 1
    %p72 = por %p70, %p71
    %p73 = scmp.ne.s32.totalorder %s65, %s68
    %p74 = scmp.eq.s32.totalorder %s8, 0
    %p75 = por %p73, %p74
    %p76 = scmp.ne.s32.totalorder %s65, %s68
    %p77 = scmp.eq.s32.totalorder %s13, 1
    %p78 = por %p76, %p77
    %p79 = scmp.ne.s32.totalorder %s68, %s69
    %p80 = scmp.eq.s32.totalorder %s13, 0
    %p81 = por %p79, %p80
    %p82 = scmp.ne.s32.totalorder %s68, %s69
    %p83 = scmp.eq.s32.totalorder %s14, 1
    %p84 = por %p82, %p83
    %p86 = scmp.ne.s32.totalorder %s69, %s85
    %p87 = scmp.eq.s32.totalorder %s14, 0
    %p88 = por %p86, %p87
    %p89 = scmp.le.s32.totalorder 1, %s8
    %p90 = scmp.lt.s32.totalorder %s8, 3
    %p91 = pnand %p89, %p90
    %p92 = pneg %p91
    // Predicated region
    $region9: #{losses_forward.1} parent=5 // pred_check
      _
    $region10: #{losses_forward.1} parent=5 // pred_check_branch
      %94 = sbr.rel (%p91) target = $region12
    $region11: #{losses_forward.1} parent=5 // pred_region
      %s95 = ssub.s32 %s8, 1
      // Predicated region
      $region13: #{losses_forward.1} parent=11 // pred_check
        %p96 = pneg %p55
      $region14: #{losses_forward.1} parent=11 // pred_check_branch
        %98 = sbr.rel (%p96) target = $region16
      $region15: #{losses_forward.1} parent=11 // pred_region
        _
      $region16: #{losses_forward.1} parent=11 // pred_fallthru
        _
    $region12: #{losses_forward.1} parent=5 // pred_fallthru
      _
    %p99 = scmp.lt.s32.totalorder %s8, 2
    // Predicated region
    $region17: #{losses_forward.1} parent=5 // pred_check
      %p100 = pneg %p99
    $region18: #{losses_forward.1} parent=5 // pred_check_branch
      %102 = sbr.rel (%p100) target = $region20
    $region19: #{losses_forward.1} parent=5 // pred_region
      // Predicated region
      $region21: #{losses_forward.1} parent=19 // pred_check
        %p103 = pneg %p28
      $region22: #{losses_forward.1} parent=19 // pred_check_branch
        %105 = sbr.rel (%p103) target = $region24
      $region23: #{losses_forward.1} parent=19 // pred_region
        %s106 = smul.u32 64, %s8
        %p107 = scmp.lt.s32.totalorder %s106, 127
        %s108 = scalar_select %p107, %s106, 127
        %s109 = smul.addr %s108, 8
        %s110 = scalar_lea.vmem %s0, %s109
        %s111 = smul.u32 64, %s8
      $region24: #{losses_forward.1} parent=19 // pred_fallthru
        _
    $region20: #{losses_forward.1} parent=5 // pred_fallthru
      _
    %p112 = scmp.le.s32.totalorder 1, %s8
    %p113 = scmp.lt.s32.totalorder %s8, 3
    %p114 = pnand %p112, %p113
    %p115 = pneg %p114
    // Predicated region
    $region25: #{losses_forward.1} parent=5 // pred_check
      _
    $region26: #{losses_forward.1} parent=5 // pred_check_branch
      %117 = sbr.rel (%p114) target = $region28
    $region27: #{losses_forward.1} parent=5 // pred_region
      %s118 = ssub.s32 %s8, 1
      %s119 = smul.u32 64, %s13
      %p120 = scmp.lt.s32.totalorder %s119, 127
      %s121 = scalar_select %p120, %s119, 127
      %s122 = smul.addr %s121, 8
      %s123 = scalar_lea.vmem %s0, %s122
      %p124 = pneg %p34
      %p125 = pneg %p31
      %p126 = pneg %p55
      %p127 = pneg %p52
      %p128 = pneg %p81
      %p129 = pneg %p78
      %p130 = scmp.lt.s32.totalorder %s13, 1
      %s131 = scalar_select %p130, %s13, 1
      %s132 = smul.addr %s131, 4
      %s133 = smul.addr %s132, 8
      %s134 = scalar_lea.vmem %s2, %s133
      %s135 = smul.u32 64, %s13
      %p136 = scmp.lt.s32.totalorder %s135, 127
      %s137 = scalar_select %p136, %s135, 127
      %s138 = smul.addr %s137, 8
      %s139 = scalar_lea.vmem %s0, %s138
      %s140 = smul.u32 64, %s13
      %p141 = scmp.lt.s32.totalorder %s13, 1
      %s142 = scalar_select %p141, %s13, 1
      %s143 = smul.addr %s142, 4
      %s144 = smul.addr %s143, 8
      %s145 = scalar_lea.vmem %s2, %s144
      %146 = vst [vmem:[%s145] sm:$0xff] 0.0
      %147 = vst [vmem:[%s145 + $0x8] sm:$0xff] 0.0
      %148 = vst [vmem:[%s145 + $0x10] sm:$0xff] 0.0
      %149 = vst [vmem:[%s145 + $0x18] sm:$0xff] 0.0
      %v150 = vld [vmem:[%s1] sm:$0xff]
      %v151 = vld [vmem:[%s1 + $0x8] sm:$0xff]
      %v152 = vld [vmem:[%s1 + $0x10] sm:$0xff]
      %v153 = vld [vmem:[%s1 + $0x18] sm:$0xff]
      loop: start=0, step=1, limit=16
      $region29: #{losses_forward.1} parent=27 // loop_pre_header
        _
      $region30: #{losses_forward.1} parent=27 // loop_header
        %s155 = sphi 0, %s159
        %p156 = scmp.ge.s32.totalorder %s155, 16
      $region31: #{losses_forward.1} parent=27 // loop_header_branch
        %158 = sbr.rel (%p156) target = $region35
      $region32: #{losses_forward.1} parent=27 // loop_body
        %s160 = smul.u32 %s155, 512
        %s161 = sshra.s32 %s160, 7
        %s162 = sand.u32 %s160, 127
        %s163 = smul.addr %s161, 8
        %s164 = scalar_lea.vmem %s139, %s163
        %v165 = vld [vmem:[%s164] ss:$8 sm:$0xf]
        %s166 = scalar_lea.vmem %s164, 1
        %v167 = vld [vmem:[%s166] ss:$8 sm:$0xf]
        %s168 = scalar_lea.vmem %s164, 2
        %v169 = vld [vmem:[%s168] ss:$8 sm:$0xf]
        %s170 = scalar_lea.vmem %s164, 3
        %v171 = vld [vmem:[%s170] ss:$8 sm:$0xf]
        %s172 = scalar_lea.vmem %s164, 4
        %v173 = vld [vmem:[%s172] ss:$8 sm:$0xf]
        %s174 = scalar_lea.vmem %s164, 5
        %v175 = vld [vmem:[%s174] ss:$8 sm:$0xf]
        %s176 = scalar_lea.vmem %s164, 6
        %v177 = vld [vmem:[%s176] ss:$8 sm:$0xf]
        %s178 = scalar_lea.vmem %s164, 7
        %v179 = vld [vmem:[%s178] ss:$8 sm:$0xf]
        %v180 = vmul.f32 %v165, %v165
        %v181 = vmul.f32 %v167, %v167
        %v182 = vadd.f32 %v180, %v181
        %v183 = vmul.f32 %v169, %v169
        %v184 = vadd.f32 %v182, %v183
        %v185 = vmax.f32 %v184, 1e-06
        %v186 = vrsqrt.pop %v185
        %v187 = vsub.f32 0.0, %v186
        %v189 = vlaneseq
        %v190 = vshrl.u32 %v189, 7
        %v191 = vsub.s32 0, %v190
        %v192 = vrot.slane %v165, %v191
        %v193 = vlaneseq
        %v194 = vshrl.u32 %v193, 7
        %v195 = vsub.s32 1, %v194
        %v196 = vrot.slane %v165, %v195
        %v197 = vlaneseq
        %v198 = vshrl.u32 %v197, 7
        %v199 = vsub.s32 2, %v198
        %v200 = vrot.slane %v165, %v199
        %v201 = vlaneseq
        %v202 = vshrl.u32 %v201, 7
        %v203 = vsub.s32 3, %v202
        %v204 = vrot.slane %v165, %v203
        %v210 = vlaneseq
        %v211 = vshrl.u32 %v210, 7
        %v212 = vsub.s32 0, %v211
        %v213 = vrot.slane %v167, %v212
        %v214 = vlaneseq
        %v215 = vshrl.u32 %v214, 7
        %v216 = vsub.s32 1, %v215
        %v217 = vrot.slane %v167, %v216
        %v218 = vlaneseq
        %v219 = vshrl.u32 %v218, 7
        %v220 = vsub.s32 2, %v219
        %v221 = vrot.slane %v167, %v220
        %v222 = vlaneseq
        %v223 = vshrl.u32 %v222, 7
        %v224 = vsub.s32 3, %v223
        %v225 = vrot.slane %v167, %v224
        %v231 = vlaneseq
        %v232 = vshrl.u32 %v231, 7
        %v233 = vsub.s32 0, %v232
        %v234 = vrot.slane %v169, %v233
        %v235 = vlaneseq
        %v236 = vshrl.u32 %v235, 7
        %v237 = vsub.s32 1, %v236
        %v238 = vrot.slane %v169, %v237
        %v239 = vlaneseq
        %v240 = vshrl.u32 %v239, 7
        %v241 = vsub.s32 2, %v240
        %v242 = vrot.slane %v169, %v241
        %v243 = vlaneseq
        %v244 = vshrl.u32 %v243, 7
        %v245 = vsub.s32 3, %v244
        %v246 = vrot.slane %v169, %v245
        %252 = vset.pattern.permute.xlu0 0
        %253 = vperm.xlu0 %252, %v150
        %v254 = vpop.permute.xlu0 %253
        %v256 = vmul.f32 %v254, %v192
        %v257 = vmul.f32 %v254, %v196
        %v258 = vmul.f32 %v254, %v200
        %v259 = vmul.f32 %v254, %v204
        %260 = vset.pattern.permute.xlu0 1
        %261 = vperm.xlu0 %260, %v150
        %v262 = vpop.permute.xlu0 %261
        %v264 = vmul.f32 %v262, %v213
        %v265 = vmul.f32 %v262, %v217
        %v266 = vmul.f32 %v262, %v221
        %v267 = vmul.f32 %v262, %v225
        %v268 = vadd.f32 %v256, %v264
        %v269 = vadd.f32 %v257, %v265
        %v270 = vadd.f32 %v258, %v266
        %v271 = vadd.f32 %v259, %v267
        %272 = vset.pattern.permute.xlu0 2
        %273 = vperm.xlu0 %272, %v150
        %v274 = vpop.permute.xlu0 %273
        %v276 = vmul.f32 %v274, %v234
        %v277 = vmul.f32 %v274, %v238
        %v278 = vmul.f32 %v274, %v242
        %v279 = vmul.f32 %v274, %v246
        %v280 = vadd.f32 %v268, %v276
        %v281 = vadd.f32 %v269, %v277
        %v282 = vadd.f32 %v270, %v278
        %v283 = vadd.f32 %v271, %v279
        %284 = vset.pattern.permute.xlu0 3
        %285 = vperm.xlu0 %284, %v150
        %v286 = vpop.permute.xlu0 %285
        %v288 = vadd.f32 %v280, %v286
        %v289 = vadd.f32 %v281, %v286
        %v290 = vadd.f32 %v282, %v286
        %v291 = vadd.f32 %v283, %v286
        %v292 = vtanh.pop %v288
        %v293 = vtanh.pop %v289
        %v294 = vtanh.pop %v290
        %v295 = vtanh.pop %v291
        %v296 = vmul.f32 %v292, -2.0
        %v297 = vmul.f32 %v293, -2.0
        %v298 = vmul.f32 %v294, -2.0
        %v299 = vmul.f32 %v295, -2.0
        %v300 = vmul.f32 %v292, %v292
        %v301 = vmul.f32 %v293, %v293
        %v302 = vmul.f32 %v294, %v294
        %v303 = vmul.f32 %v295, %v295
        %v304 = vsub.f32 1.0, %v300
        %v305 = vsub.f32 1.0, %v301
        %v306 = vsub.f32 1.0, %v302
        %v307 = vsub.f32 1.0, %v303
        %v308 = vmul.f32 %v296, %v304
        %v309 = vmul.f32 %v297, %v305
        %v310 = vmul.f32 %v298, %v306
        %v311 = vmul.f32 %v299, %v307
        %312 = vset.pattern.permute.xlu0 4
        %313 = vperm.xlu0 %312, %v150
        %v314 = vpop.permute.xlu0 %313
        %v316 = vmul.f32 %v314, %v308
        %v317 = vmul.f32 %v314, %v309
        %v318 = vmul.f32 %v314, %v310
        %v319 = vmul.f32 %v314, %v311
        %v320 = vrot.slane %v316, 4
        %v321 = vadd.f32 %v316, %v320
        %v322 = vrot.slane %v321, 2
        %v323 = vadd.f32 %v321, %v322
        %v324 = vrot.slane %v323, 1
        %v325 = vadd.f32 %v323, %v324
        %v326 = vrot.slane %v317, 4
        %v327 = vadd.f32 %v317, %v326
        %v328 = vrot.slane %v327, 2
        %v329 = vadd.f32 %v327, %v328
        %v330 = vrot.slane %v329, 1
        %v331 = vadd.f32 %v329, %v330
        %v332 = vrot.slane %v318, 4
        %v333 = vadd.f32 %v318, %v332
        %v334 = vrot.slane %v333, 2
        %v335 = vadd.f32 %v333, %v334
        %v336 = vrot.slane %v335, 1
        %v337 = vadd.f32 %v335, %v336
        %v338 = vrot.slane %v319, 4
        %v339 = vadd.f32 %v319, %v338
        %v340 = vrot.slane %v339, 2
        %v341 = vadd.f32 %v339, %v340
        %v342 = vrot.slane %v341, 1
        %v343 = vadd.f32 %v341, %v342
        %v344 = vadd.f32 %v325, 0.0
        %v345 = vadd.f32 %v331, 0.0
        %v346 = vadd.f32 %v337, 0.0
        %v347 = vadd.f32 %v343, 0.0
        %348 = vset.pattern.permute.xlu0 5
        %349 = vperm.xlu0 %348, %v150
        %v350 = vpop.permute.xlu0 %349
        %v352 = vmul.f32 %v350, %v308
        %v353 = vmul.f32 %v350, %v309
        %v354 = vmul.f32 %v350, %v310
        %v355 = vmul.f32 %v350, %v311
        %v356 = vrot.slane %v352, 4
        %v357 = vadd.f32 %v352, %v356
        %v358 = vrot.slane %v357, 2
        %v359 = vadd.f32 %v357, %v358
        %v360 = vrot.slane %v359, 1
        %v361 = vadd.f32 %v359, %v360
        %v362 = vrot.slane %v353, 4
        %v363 = vadd.f32 %v353, %v362
        %v364 = vrot.slane %v363, 2
        %v365 = vadd.f32 %v363, %v364
        %v366 = vrot.slane %v365, 1
        %v367 = vadd.f32 %v365, %v366
        %v368 = vrot.slane %v354, 4
        %v369 = vadd.f32 %v354, %v368
        %v370 = vrot.slane %v369, 2
        %v371 = vadd.f32 %v369, %v370
        %v372 = vrot.slane %v371, 1
        %v373 = vadd.f32 %v371, %v372
        %v374 = vrot.slane %v355, 4
        %v375 = vadd.f32 %v355, %v374
        %v376 = vrot.slane %v375, 2
        %v377 = vadd.f32 %v375, %v376
        %v378 = vrot.slane %v377, 1
        %v379 = vadd.f32 %v377, %v378
        %v380 = vadd.f32 %v361, 0.0
        %v381 = vadd.f32 %v367, 0.0
        %v382 = vadd.f32 %v373, 0.0
        %v383 = vadd.f32 %v379, 0.0
        %385 = vset.pattern.permute.xlu0 0
        %386 = vperm.xlu0 %385, %v151
        %v387 = vpop.permute.xlu0 %386
        %v389 = vmul.f32 %v387, %v192
        %v390 = vmul.f32 %v387, %v196
        %v391 = vmul.f32 %v387, %v200
        %v392 = vmul.f32 %v387, %v204
        %393 = vset.pattern.permute.xlu0 1
        %394 = vperm.xlu0 %393, %v151
        %v395 = vpop.permute.xlu0 %394
        %v397 = vmul.f32 %v395, %v213
        %v398 = vmul.f32 %v395, %v217
        %v399 = vmul.f32 %v395, %v221
        %v400 = vmul.f32 %v395, %v225
        %v401 = vadd.f32 %v389, %v397
        %v402 = vadd.f32 %v390, %v398
        %v403 = vadd.f32 %v391, %v399
        %v404 = vadd.f32 %v392, %v400
        %405 = vset.pattern.permute.xlu0 2
        %406 = vperm.xlu0 %405, %v151
        %v407 = vpop.permute.xlu0 %406
        %v409 = vmul.f32 %v407, %v234
        %v410 = vmul.f32 %v407, %v238
        %v411 = vmul.f32 %v407, %v242
        %v412 = vmul.f32 %v407, %v246
        %v413 = vadd.f32 %v401, %v409
        %v414 = vadd.f32 %v402, %v410
        %v415 = vadd.f32 %v403, %v411
        %v416 = vadd.f32 %v404, %v412
        %417 = vset.pattern.permute.xlu0 3
        %418 = vperm.xlu0 %417, %v151
        %v419 = vpop.permute.xlu0 %418
        %v421 = vadd.f32 %v413, %v419
        %v422 = vadd.f32 %v414, %v419
        %v423 = vadd.f32 %v415, %v419
        %v424 = vadd.f32 %v416, %v419
        %v425 = vtanh.pop %v421
        %v426 = vtanh.pop %v422
        %v427 = vtanh.pop %v423
        %v428 = vtanh.pop %v424
        %v429 = vmul.f32 %v425, -2.0
        %v430 = vmul.f32 %v426, -2.0
        %v431 = vmul.f32 %v427, -2.0
        %v432 = vmul.f32 %v428, -2.0
        %v433 = vmul.f32 %v425, %v425
        %v434 = vmul.f32 %v426, %v426
        %v435 = vmul.f32 %v427, %v427
        %v436 = vmul.f32 %v428, %v428
        %v437 = vsub.f32 1.0, %v433
        %v438 = vsub.f32 1.0, %v434
        %v439 = vsub.f32 1.0, %v435
        %v440 = vsub.f32 1.0, %v436
        %v441 = vmul.f32 %v429, %v437
        %v442 = vmul.f32 %v430, %v438
        %v443 = vmul.f32 %v431, %v439
        %v444 = vmul.f32 %v432, %v440
        %445 = vset.pattern.permute.xlu0 4
        %446 = vperm.xlu0 %445, %v151
        %v447 = vpop.permute.xlu0 %446
        %v449 = vmul.f32 %v447, %v441
        %v450 = vmul.f32 %v447, %v442
        %v451 = vmul.f32 %v447, %v443
        %v452 = vmul.f32 %v447, %v444
        %v453 = vrot.slane %v449, 4
        %v454 = vadd.f32 %v449, %v453
        %v455 = vrot.slane %v454, 2
        %v456 = vadd.f32 %v454, %v455
        %v457 = vrot.slane %v456, 1
        %v458 = vadd.f32 %v456, %v457
        %v459 = vrot.slane %v450, 4
        %v460 = vadd.f32 %v450, %v459
        %v461 = vrot.slane %v460, 2
        %v462 = vadd.f32 %v460, %v461
        %v463 = vrot.slane %v462, 1
        %v464 = vadd.f32 %v462, %v463
        %v465 = vrot.slane %v451, 4
        %v466 = vadd.f32 %v451, %v465
        %v467 = vrot.slane %v466, 2
        %v468 = vadd.f32 %v466, %v467
        %v469 = vrot.slane %v468, 1
        %v470 = vadd.f32 %v468, %v469
        %v471 = vrot.slane %v452, 4
        %v472 = vadd.f32 %v452, %v471
        %v473 = vrot.slane %v472, 2
        %v474 = vadd.f32 %v472, %v473
        %v475 = vrot.slane %v474, 1
        %v476 = vadd.f32 %v474, %v475
        %v477 = vadd.f32 %v344, %v458
        %v478 = vadd.f32 %v345, %v464
        %v479 = vadd.f32 %v346, %v470
        %v480 = vadd.f32 %v347, %v476
        %481 = vset.pattern.permute.xlu0 5
        %482 = vperm.xlu0 %481, %v151
        %v483 = vpop.permute.xlu0 %482
        %v485 = vmul.f32 %v483, %v441
        %v486 = vmul.f32 %v483, %v442
        %v487 = vmul.f32 %v483, %v443
        %v488 = vmul.f32 %v483, %v444
        %v489 = vrot.slane %v485, 4
        %v490 = vadd.f32 %v485, %v489
        %v491 = vrot.slane %v490, 2
        %v492 = vadd.f32 %v490, %v491
        %v493 = vrot.slane %v492, 1
        %v494 = vadd.f32 %v492, %v493
        %v495 = vrot.slane %v486, 4
        %v496 = vadd.f32 %v486, %v495
        %v497 = vrot.slane %v496, 2
        %v498 = vadd.f32 %v496, %v497
        %v499 = vrot.slane %v498, 1
        %v500 = vadd.f32 %v498, %v499
        %v501 = vrot.slane %v487, 4
        %v502 = vadd.f32 %v487, %v501
        %v503 = vrot.slane %v502, 2
        %v504 = vadd.f32 %v502, %v503
        %v505 = vrot.slane %v504, 1
        %v506 = vadd.f32 %v504, %v505
        %v507 = vrot.slane %v488, 4
        %v508 = vadd.f32 %v488, %v507
        %v509 = vrot.slane %v508, 2
        %v510 = vadd.f32 %v508, %v509
        %v511 = vrot.slane %v510, 1
        %v512 = vadd.f32 %v510, %v511
        %v513 = vadd.f32 %v380, %v494
        %v514 = vadd.f32 %v381, %v500
        %v515 = vadd.f32 %v382, %v506
        %v516 = vadd.f32 %v383, %v512
        %518 = vset.pattern.permute.xlu0 0
        %519 = vperm.xlu0 %518, %v152
        %v520 = vpop.permute.xlu0 %519
        %v522 = vmul.f32 %v520, %v192
        %v523 = vmul.f32 %v520, %v196
        %v524 = vmul.f32 %v520, %v200
        %v525 = vmul.f32 %v520, %v204
        %526 = vset.pattern.permute.xlu0 1
        %527 = vperm.xlu0 %526, %v152
        %v528 = vpop.permute.xlu0 %527
        %v530 = vmul.f32 %v528, %v213
        %v531 = vmul.f32 %v528, %v217
        %v532 = vmul.f32 %v528, %v221
        %v533 = vmul.f32 %v528, %v225
        %v534 = vadd.f32 %v522, %v530
        %v535 = vadd.f32 %v523, %v531
        %v536 = vadd.f32 %v524, %v532
        %v537 = vadd.f32 %v525, %v533
        %538 = vset.pattern.permute.xlu0 2
        %539 = vperm.xlu0 %538, %v152
        %v540 = vpop.permute.xlu0 %539
        %v542 = vmul.f32 %v540, %v234
        %v543 = vmul.f32 %v540, %v238
        %v544 = vmul.f32 %v540, %v242
        %v545 = vmul.f32 %v540, %v246
        %v546 = vadd.f32 %v534, %v542
        %v547 = vadd.f32 %v535, %v543
        %v548 = vadd.f32 %v536, %v544
        %v549 = vadd.f32 %v537, %v545
        %550 = vset.pattern.permute.xlu0 3
        %551 = vperm.xlu0 %550, %v152
        %v552 = vpop.permute.xlu0 %551
        %v554 = vadd.f32 %v546, %v552
        %v555 = vadd.f32 %v547, %v552
        %v556 = vadd.f32 %v548, %v552
        %v557 = vadd.f32 %v549, %v552
        %v558 = vtanh.pop %v554
        %v559 = vtanh.pop %v555
        %v560 = vtanh.pop %v556
        %v561 = vtanh.pop %v557
        %v562 = vmul.f32 %v558, -2.0
        %v563 = vmul.f32 %v559, -2.0
        %v564 = vmul.f32 %v560, -2.0
        %v565 = vmul.f32 %v561, -2.0
        %v566 = vmul.f32 %v558, %v558
        %v567 = vmul.f32 %v559, %v559
        %v568 = vmul.f32 %v560, %v560
        %v569 = vmul.f32 %v561, %v561
        %v570 = vsub.f32 1.0, %v566
        %v571 = vsub.f32 1.0, %v567
        %v572 = vsub.f32 1.0, %v568
        %v573 = vsub.f32 1.0, %v569
        %v574 = vmul.f32 %v562, %v570
        %v575 = vmul.f32 %v563, %v571
        %v576 = vmul.f32 %v564, %v572
        %v577 = vmul.f32 %v565, %v573
        %578 = vset.pattern.permute.xlu0 4
        %579 = vperm.xlu0 %578, %v152
        %v580 = vpop.permute.xlu0 %579
        %v582 = vmul.f32 %v580, %v574
        %v583 = vmul.f32 %v580, %v575
        %v584 = vmul.f32 %v580, %v576
        %v585 = vmul.f32 %v580, %v577
        %v586 = vrot.slane %v582, 4
        %v587 = vadd.f32 %v582, %v586
        %v588 = vrot.slane %v587, 2
        %v589 = vadd.f32 %v587, %v588
        %v590 = vrot.slane %v589, 1
        %v591 = vadd.f32 %v589, %v590
        %v592 = vrot.slane %v583, 4
        %v593 = vadd.f32 %v583, %v592
        %v594 = vrot.slane %v593, 2
        %v595 = vadd.f32 %v593, %v594
        %v596 = vrot.slane %v595, 1
        %v597 = vadd.f32 %v595, %v596
        %v598 = vrot.slane %v584, 4
        %v599 = vadd.f32 %v584, %v598
        %v600 = vrot.slane %v599, 2
        %v601 = vadd.f32 %v599, %v600
        %v602 = vrot.slane %v601, 1
        %v603 = vadd.f32 %v601, %v602
        %v604 = vrot.slane %v585, 4
        %v605 = vadd.f32 %v585, %v604
        %v606 = vrot.slane %v605, 2
        %v607 = vadd.f32 %v605, %v606
        %v608 = vrot.slane %v607, 1
        %v609 = vadd.f32 %v607, %v608
        %v610 = vadd.f32 %v477, %v591
        %v611 = vadd.f32 %v478, %v597
        %v612 = vadd.f32 %v479, %v603
        %v613 = vadd.f32 %v480, %v609
        %614 = vset.pattern.permute.xlu0 5
        %615 = vperm.xlu0 %614, %v152
        %v616 = vpop.permute.xlu0 %615
        %v618 = vmul.f32 %v616, %v574
        %v619 = vmul.f32 %v616, %v575
        %v620 = vmul.f32 %v616, %v576
        %v621 = vmul.f32 %v616, %v577
        %v622 = vrot.slane %v618, 4
        %v623 = vadd.f32 %v618, %v622
        %v624 = vrot.slane %v623, 2
        %v625 = vadd.f32 %v623, %v624
        %v626 = vrot.slane %v625, 1
        %v627 = vadd.f32 %v625, %v626
        %v628 = vrot.slane %v619, 4
        %v629 = vadd.f32 %v619, %v628
        %v630 = vrot.slane %v629, 2
        %v631 = vadd.f32 %v629, %v630
        %v632 = vrot.slane %v631, 1
        %v633 = vadd.f32 %v631, %v632
        %v634 = vrot.slane %v620, 4
        %v635 = vadd.f32 %v620, %v634
        %v636 = vrot.slane %v635, 2
        %v637 = vadd.f32 %v635, %v636
        %v638 = vrot.slane %v637, 1
        %v639 = vadd.f32 %v637, %v638
        %v640 = vrot.slane %v621, 4
        %v641 = vadd.f32 %v621, %v640
        %v642 = vrot.slane %v641, 2
        %v643 = vadd.f32 %v641, %v642
        %v644 = vrot.slane %v643, 1
        %v645 = vadd.f32 %v643, %v644
        %v646 = vadd.f32 %v513, %v627
        %v647 = vadd.f32 %v514, %v633
        %v648 = vadd.f32 %v515, %v639
        %v649 = vadd.f32 %v516, %v645
        %651 = vset.pattern.permute.xlu0 0
        %652 = vperm.xlu0 %651, %v153
        %v653 = vpop.permute.xlu0 %652
        %v655 = vmul.f32 %v653, %v192
        %v656 = vmul.f32 %v653, %v196
        %v657 = vmul.f32 %v653, %v200
        %v658 = vmul.f32 %v653, %v204
        %659 = vset.pattern.permute.xlu0 1
        %660 = vperm.xlu0 %659, %v153
        %v661 = vpop.permute.xlu0 %660
        %v663 = vmul.f32 %v661, %v213
        %v664 = vmul.f32 %v661, %v217
        %v665 = vmul.f32 %v661, %v221
        %v666 = vmul.f32 %v661, %v225
        %v667 = vadd.f32 %v655, %v663
        %v668 = vadd.f32 %v656, %v664
        %v669 = vadd.f32 %v657, %v665
        %v670 = vadd.f32 %v658, %v666
        %671 = vset.pattern.permute.xlu0 2
        %672 = vperm.xlu0 %671, %v153
        %v673 = vpop.permute.xlu0 %672
        %v675 = vmul.f32 %v673, %v234
        %v676 = vmul.f32 %v673, %v238
        %v677 = vmul.f32 %v673, %v242
        %v678 = vmul.f32 %v673, %v246
        %v679 = vadd.f32 %v667, %v675
        %v680 = vadd.f32 %v668, %v676
        %v681 = vadd.f32 %v669, %v677
        %v682 = vadd.f32 %v670, %v678
        %683 = vset.pattern.permute.xlu0 3
        %684 = vperm.xlu0 %683, %v153
        %v685 = vpop.permute.xlu0 %684
        %v687 = vadd.f32 %v679, %v685
        %v688 = vadd.f32 %v680, %v685
        %v689 = vadd.f32 %v681, %v685
        %v690 = vadd.f32 %v682, %v685
        %v691 = vtanh.pop %v687
        %v692 = vtanh.pop %v688
        %v693 = vtanh.pop %v689
        %v694 = vtanh.pop %v690
        %v695 = vmul.f32 %v691, -2.0
        %v696 = vmul.f32 %v692, -2.0
        %v697 = vmul.f32 %v693, -2.0
        %v698 = vmul.f32 %v694, -2.0
        %v699 = vmul.f32 %v691, %v691
        %v700 = vmul.f32 %v692, %v692
        %v701 = vmul.f32 %v693, %v693
        %v702 = vmul.f32 %v694, %v694
        %v703 = vsub.f32 1.0, %v699
        %v704 = vsub.f32 1.0, %v700
        %v705 = vsub.f32 1.0, %v701
        %v706 = vsub.f32 1.0, %v702
        %v707 = vmul.f32 %v695, %v703
        %v708 = vmul.f32 %v696, %v704
        %v709 = vmul.f32 %v697, %v705
        %v710 = vmul.f32 %v698, %v706
        %711 = vset.pattern.permute.xlu0 4
        %712 = vperm.xlu0 %711, %v153
        %v713 = vpop.permute.xlu0 %712
        %v715 = vmul.f32 %v713, %v707
        %v716 = vmul.f32 %v713, %v708
        %v717 = vmul.f32 %v713, %v709
        %v718 = vmul.f32 %v713, %v710
        %v719 = vrot.slane %v715, 4
        %v720 = vadd.f32 %v715, %v719
        %v721 = vrot.slane %v720, 2
        %v722 = vadd.f32 %v720, %v721
        %v723 = vrot.slane %v722, 1
        %v724 = vadd.f32 %v722, %v723
        %v725 = vrot.slane %v716, 4
        %v726 = vadd.f32 %v716, %v725
        %v727 = vrot.slane %v726, 2
        %v728 = vadd.f32 %v726, %v727
        %v729 = vrot.slane %v728, 1
        %v730 = vadd.f32 %v728, %v729
        %v731 = vrot.slane %v717, 4
        %v732 = vadd.f32 %v717, %v731
        %v733 = vrot.slane %v732, 2
        %v734 = vadd.f32 %v732, %v733
        %v735 = vrot.slane %v734, 1
        %v736 = vadd.f32 %v734, %v735
        %v737 = vrot.slane %v718, 4
        %v738 = vadd.f32 %v718, %v737
        %v739 = vrot.slane %v738, 2
        %v740 = vadd.f32 %v738, %v739
        %v741 = vrot.slane %v740, 1
        %v742 = vadd.f32 %v740, %v741
        %v743 = vadd.f32 %v610, %v724
        %v744 = vadd.f32 %v611, %v730
        %v745 = vadd.f32 %v612, %v736
        %v746 = vadd.f32 %v613, %v742
        %747 = vset.pattern.permute.xlu0 5
        %748 = vperm.xlu0 %747, %v153
        %v749 = vpop.permute.xlu0 %748
        %v751 = vmul.f32 %v749, %v707
        %v752 = vmul.f32 %v749, %v708
        %v753 = vmul.f32 %v749, %v709
        %v754 = vmul.f32 %v749, %v710
        %v755 = vrot.slane %v751, 4
        %v756 = vadd.f32 %v751, %v755
        %v757 = vrot.slane %v756, 2
        %v758 = vadd.f32 %v756, %v757
        %v759 = vrot.slane %v758, 1
        %v760 = vadd.f32 %v758, %v759
        %v761 = vrot.slane %v752, 4
        %v762 = vadd.f32 %v752, %v761
        %v763 = vrot.slane %v762, 2
        %v764 = vadd.f32 %v762, %v763
        %v765 = vrot.slane %v764, 1
        %v766 = vadd.f32 %v764, %v765
        %v767 = vrot.slane %v753, 4
        %v768 = vadd.f32 %v753, %v767
        %v769 = vrot.slane %v768, 2
        %v770 = vadd.f32 %v768, %v769
        %v771 = vrot.slane %v770, 1
        %v772 = vadd.f32 %v770, %v771
        %v773 = vrot.slane %v754, 4
        %v774 = vadd.f32 %v754, %v773
        %v775 = vrot.slane %v774, 2
        %v776 = vadd.f32 %v774, %v775
        %v777 = vrot.slane %v776, 1
        %v778 = vadd.f32 %v776, %v777
        %v779 = vadd.f32 %v646, %v760
        %v780 = vadd.f32 %v647, %v766
        %v781 = vadd.f32 %v648, %v772
        %v782 = vadd.f32 %v649, %v778
        %v783 = vmul.f32 %v743, -0.5
        %v784 = vmul.f32 %v744, -0.5
        %v785 = vmul.f32 %v745, -0.5
        %v786 = vmul.f32 %v746, -0.5
        %v787 = vmul.f32 %v187, %v171
        %v789 = vlaneseq
        %v790 = vshrl.u32 %v789, 7
        %v791 = vsub.s32 0, %v790
        %v792 = vrot.slane %v787, %v791
        %v793 = vlaneseq
        %v794 = vshrl.u32 %v793, 7
        %v795 = vsub.s32 1, %v794
        %v796 = vrot.slane %v787, %v795
        %v797 = vlaneseq
        %v798 = vshrl.u32 %v797, 7
        %v799 = vsub.s32 2, %v798
        %v800 = vrot.slane %v787, %v799
        %v801 = vlaneseq
        %v802 = vshrl.u32 %v801, 7
        %v803 = vsub.s32 3, %v802
        %v804 = vrot.slane %v787, %v803
        %v809 = vadd.f32 %v783, %v792
        %v810 = vadd.f32 %v784, %v796
        %v811 = vadd.f32 %v785, %v800
        %v812 = vadd.f32 %v786, %v804
        %v813 = vmul.f32 %v779, -0.5
        %v814 = vmul.f32 %v780, -0.5
        %v815 = vmul.f32 %v781, -0.5
        %v816 = vmul.f32 %v782, -0.5
        %v817 = vmul.f32 %v187, %v173
        %v819 = vlaneseq
        %v820 = vshrl.u32 %v819, 7
        %v821 = vsub.s32 0, %v820
        %v822 = vrot.slane %v817, %v821
        %v823 = vlaneseq
        %v824 = vshrl.u32 %v823, 7
        %v825 = vsub.s32 1, %v824
        %v826 = vrot.slane %v817, %v825
        %v827 = vlaneseq
        %v828 = vshrl.u32 %v827, 7
        %v829 = vsub.s32 2, %v828
        %v830 = vrot.slane %v817, %v829
        %v831 = vlaneseq
        %v832 = vshrl.u32 %v831, 7
        %v833 = vsub.s32 3, %v832
        %v834 = vrot.slane %v817, %v833
        %v839 = vadd.f32 %v813, %v822
        %v840 = vadd.f32 %v814, %v826
        %v841 = vadd.f32 %v815, %v830
        %v842 = vadd.f32 %v816, %v834
        %v843 = vmul.f32 %v171, %v171
        %v844 = vmul.f32 %v173, %v173
        %v845 = vadd.f32 %v843, %v844
        %v847 = vlaneseq
        %v848 = vshrl.u32 %v847, 7
        %v849 = vsub.s32 0, %v848
        %v850 = vrot.slane %v171, %v849
        %v851 = vlaneseq
        %v852 = vshrl.u32 %v851, 7
        %v853 = vsub.s32 1, %v852
        %v854 = vrot.slane %v171, %v853
        %v855 = vlaneseq
        %v856 = vshrl.u32 %v855, 7
        %v857 = vsub.s32 2, %v856
        %v858 = vrot.slane %v171, %v857
        %v859 = vlaneseq
        %v860 = vshrl.u32 %v859, 7
        %v861 = vsub.s32 3, %v860
        %v862 = vrot.slane %v171, %v861
        %v867 = vmul.f32 %v809, %v850
        %v868 = vmul.f32 %v810, %v854
        %v869 = vmul.f32 %v811, %v858
        %v870 = vmul.f32 %v812, %v862
        %v872 = vlaneseq
        %v873 = vshrl.u32 %v872, 7
        %v874 = vsub.s32 0, %v873
        %v875 = vrot.slane %v173, %v874
        %v876 = vlaneseq
        %v877 = vshrl.u32 %v876, 7
        %v878 = vsub.s32 1, %v877
        %v879 = vrot.slane %v173, %v878
        %v880 = vlaneseq
        %v881 = vshrl.u32 %v880, 7
        %v882 = vsub.s32 2, %v881
        %v883 = vrot.slane %v173, %v882
        %v884 = vlaneseq
        %v885 = vshrl.u32 %v884, 7
        %v886 = vsub.s32 3, %v885
        %v887 = vrot.slane %v173, %v886
        %v892 = vmul.f32 %v839, %v875
        %v893 = vmul.f32 %v840, %v879
        %v894 = vmul.f32 %v841, %v883
        %v895 = vmul.f32 %v842, %v887
        %v896 = vadd.f32 %v867, %v892
        %v897 = vadd.f32 %v868, %v893
        %v898 = vadd.f32 %v869, %v894
        %v899 = vadd.f32 %v870, %v895
        %v901 = vlaneseq
        %v902 = vshrl.u32 %v901, 7
        %v903 = vsub.s32 0, %v902
        %v904 = vrot.slane %v179, %v903
        %v905 = vlaneseq
        %v906 = vshrl.u32 %v905, 7
        %v907 = vsub.s32 1, %v906
        %v908 = vrot.slane %v179, %v907
        %v909 = vlaneseq
        %v910 = vshrl.u32 %v909, 7
        %v911 = vsub.s32 2, %v910
        %v912 = vrot.slane %v179, %v911
        %v913 = vlaneseq
        %v914 = vshrl.u32 %v913, 7
        %v915 = vsub.s32 3, %v914
        %v916 = vrot.slane %v179, %v915
        %v921 = vmul.f32 %v896, %v904
        %v922 = vmul.f32 %v897, %v908
        %v923 = vmul.f32 %v898, %v912
        %v924 = vmul.f32 %v899, %v916
        %v925 = vmul.f32 %v845, %v179
        %v926 = vmul.f32 %v845, %v185
        %v927 = vmul.f32 %v926, %v179
        %v928 = vmul.f32 %v809, %v809
        %v929 = vmul.f32 %v810, %v810
        %v930 = vmul.f32 %v811, %v811
        %v931 = vmul.f32 %v812, %v812
        %v932 = vmul.f32 %v839, %v839
        %v933 = vmul.f32 %v840, %v840
        %v934 = vmul.f32 %v841, %v841
        %v935 = vmul.f32 %v842, %v842
        %v936 = vadd.f32 %v928, %v932
        %v937 = vadd.f32 %v929, %v933
        %v938 = vadd.f32 %v930, %v934
        %v939 = vadd.f32 %v931, %v935
        %v941 = vlaneseq
        %v942 = vshrl.u32 %v941, 7
        %v943 = vsub.s32 0, %v942
        %v944 = vrot.slane %v175, %v943
        %v945 = vlaneseq
        %v946 = vshrl.u32 %v945, 7
        %v947 = vsub.s32 1, %v946
        %v948 = vrot.slane %v175, %v947
        %v949 = vlaneseq
        %v950 = vshrl.u32 %v949, 7
        %v951 = vsub.s32 2, %v950
        %v952 = vrot.slane %v175, %v951
        %v953 = vlaneseq
        %v954 = vshrl.u32 %v953, 7
        %v955 = vsub.s32 3, %v954
        %v956 = vrot.slane %v175, %v955
        %v961 = vmul.f32 %v809, %v944
        %v962 = vmul.f32 %v810, %v948
        %v963 = vmul.f32 %v811, %v952
        %v964 = vmul.f32 %v812, %v956
        %v966 = vlaneseq
        %v967 = vshrl.u32 %v966, 7
        %v968 = vsub.s32 0, %v967
        %v969 = vrot.slane %v177, %v968
        %v970 = vlaneseq
        %v971 = vshrl.u32 %v970, 7
        %v972 = vsub.s32 1, %v971
        %v973 = vrot.slane %v177, %v972
        %v974 = vlaneseq
        %v975 = vshrl.u32 %v974, 7
        %v976 = vsub.s32 2, %v975
        %v977 = vrot.slane %v177, %v976
        %v978 = vlaneseq
        %v979 = vshrl.u32 %v978, 7
        %v980 = vsub.s32 3, %v979
        %v981 = vrot.slane %v177, %v980
        %v986 = vmul.f32 %v839, %v969
        %v987 = vmul.f32 %v840, %v973
        %v988 = vmul.f32 %v841, %v977
        %v989 = vmul.f32 %v842, %v981
        %v990 = vadd.f32 %v961, %v986
        %v991 = vadd.f32 %v962, %v987
        %v992 = vadd.f32 %v963, %v988
        %v993 = vadd.f32 %v964, %v989
        %v994 = vmul.f32 %v175, %v175
        %v995 = vmul.f32 %v177, %v177
        %v996 = vadd.f32 %v994, %v995
        %v997 = vsub.f32 %v171, %v175
        %v998 = vmul.f32 %v997, %v997
        %v999 = vsub.f32 %v173, %v177
        %v1000 = vmul.f32 %v999, %v999
        %v1001 = vadd.f32 %v998, %v1000
        %v1002 = vld [vmem:[%s145] ss:$8 sm:$0xf]
        %v1007 = vcombine.low %v921, %v922
        %v1008 = vcombine.low %v923, %v924
        %v1010 = vunpack.c.l.s4 1966171168
        %v1011 = vunpack.c.0.s8 %v1010
        %v1012 = vlaneseq
        %v1013 = vshrl.u32 %v1012, 7
        %v1014 = vsub.s32 %v1011, %v1013
        %v1015 = vrot.slane %v1007, %v1014
        %v1017 = vunpack.c.l.s4 1966171168
        %v1018 = vunpack.c.0.s8 %v1017
        %v1019 = vlaneseq
        %v1020 = vshrl.u32 %v1019, 7
        %v1021 = vsub.s32 %v1018, %v1020
        %v1022 = vrot.slane %v1008, %v1021
        %v1023 = vcombine.low %v1015, %v1022
        %v1025 = vunpack.c.l.s4 1966171168
        %v1026 = vunpack.c.0.s8 %v1025
        %v1027 = vlaneseq
        %v1028 = vshrl.u32 %v1027, 7
        %v1029 = vsub.s32 %v1026, %v1028
        %v1030 = vrot.slane %v1023, %v1029
        %v1032 = vadd.f32 %v1002, %v1030
        %v1033 = vlaneseq
        %vm1034 = vcmp.ge.s32.totalorder %v1033, 0
        %vm1035 = vcmp.lt.s32.totalorder %v1033, 512
        %vm1036 = vmand %vm1034, %vm1035
        %1037 = vst.msk [vmem:[%s145] ss:$8 sm:$0xf] %vm1036, %v1032
        %1038 = vst.msk [vmem:[%s145] ss:$8 sm:$0x0] %vm1036, %v1032
        %s1039 = scalar_lea.vmem %s145, 1
        %v1040 = vld [vmem:[%s1039] ss:$8 sm:$0xf]
        %v1041 = vadd.f32 %v1040, %v925
        %1042 = vst.msk [vmem:[%s1039] ss:$8 sm:$0xf] %vm1036, %v1041
        %1043 = vst.msk [vmem:[%s1039] ss:$8 sm:$0x0] %vm1036, %v1041
        %s1044 = scalar_lea.vmem %s145, 2
        %v1045 = vld [vmem:[%s1044] ss:$8 sm:$0xf]
        %v1046 = vadd.f32 %v1045, %v927
        %1047 = vst.msk [vmem:[%s1044] ss:$8 sm:$0xf] %vm1036, %v1046
        %1048 = vst.msk [vmem:[%s1044] ss:$8 sm:$0x0] %vm1036, %v1046
        %s1049 = scalar_lea.vmem %s145, 3
        %v1050 = vld [vmem:[%s1049] ss:$8 sm:$0xf]
        %v1055 = vcombine.low %v936, %v937
        %v1056 = vcombine.low %v938, %v939
        %v1058 = vunpack.c.l.s4 1966171168
        %v1059 = vunpack.c.0.s8 %v1058
        %v1060 = vlaneseq
        %v1061 = vshrl.u32 %v1060, 7
        %v1062 = vsub.s32 %v1059, %v1061
        %v1063 = vrot.slane %v1055, %v1062
        %v1065 = vunpack.c.l.s4 1966171168
        %v1066 = vunpack.c.0.s8 %v1065
        %v1067 = vlaneseq
        %v1068 = vshrl.u32 %v1067, 7
        %v1069 = vsub.s32 %v1066, %v1068
        %v1070 = vrot.slane %v1056, %v1069
        %v1071 = vcombine.low %v1063, %v1070
        %v1073 = vunpack.c.l.s4 1966171168
        %v1074 = vunpack.c.0.s8 %v1073
        %v1075 = vlaneseq
        %v1076 = vshrl.u32 %v1075, 7
        %v1077 = vsub.s32 %v1074, %v1076
        %v1078 = vrot.slane %v1071, %v1077
        %v1080 = vadd.f32 %v1050, %v1078
        %1081 = vst.msk [vmem:[%s1049] ss:$8 sm:$0xf] %vm1036, %v1080
        %1082 = vst.msk [vmem:[%s1049] ss:$8 sm:$0x0] %vm1036, %v1080
        %s1083 = scalar_lea.vmem %s145, 4
        %v1084 = vld [vmem:[%s1083] ss:$8 sm:$0xf]
        %v1089 = vcombine.low %v990, %v991
        %v1090 = vcombine.low %v992, %v993
        %v1092 = vunpack.c.l.s4 1966171168
        %v1093 = vunpack.c.0.s8 %v1092
        %v1094 = vlaneseq
        %v1095 = vshrl.u32 %v1094, 7
        %v1096 = vsub.s32 %v1093, %v1095
        %v1097 = vrot.slane %v1089, %v1096
        %v1099 = vunpack.c.l.s4 1966171168
        %v1100 = vunpack.c.0.s8 %v1099
        %v1101 = vlaneseq
        %v1102 = vshrl.u32 %v1101, 7
        %v1103 = vsub.s32 %v1100, %v1102
        %v1104 = vrot.slane %v1090, %v1103
        %v1105 = vcombine.low %v1097, %v1104
        %v1107 = vunpack.c.l.s4 1966171168
        %v1108 = vunpack.c.0.s8 %v1107
        %v1109 = vlaneseq
        %v1110 = vshrl.u32 %v1109, 7
        %v1111 = vsub.s32 %v1108, %v1110
        %v1112 = vrot.slane %v1105, %v1111
        %v1114 = vadd.f32 %v1084, %v1112
        %1115 = vst.msk [vmem:[%s1083] ss:$8 sm:$0xf] %vm1036, %v1114
        %1116 = vst.msk [vmem:[%s1083] ss:$8 sm:$0x0] %vm1036, %v1114
        %s1117 = scalar_lea.vmem %s145, 5
        %v1118 = vld [vmem:[%s1117] ss:$8 sm:$0xf]
        %v1119 = vadd.f32 %v1118, %v996
        %1120 = vst.msk [vmem:[%s1117] ss:$8 sm:$0xf] %vm1036, %v1119
        %1121 = vst.msk [vmem:[%s1117] ss:$8 sm:$0x0] %vm1036, %v1119
        %s1122 = scalar_lea.vmem %s145, 6
        %v1123 = vld [vmem:[%s1122] ss:$8 sm:$0xf]
        %v1124 = vadd.f32 %v1123, %v1001
        %1125 = vst.msk [vmem:[%s1122] ss:$8 sm:$0xf] %vm1036, %v1124
        %1126 = vst.msk [vmem:[%s1122] ss:$8 sm:$0x0] %vm1036, %v1124
      $region33: #{losses_forward.1} parent=27 // loop_footer
        %s159 = sadd.s32 1, %s155
      $region34: #{losses_forward.1} parent=27 // loop_footer_branch
        %154 = sbr.rel target = $region30
      $region35: #{losses_forward.1} parent=27 // loop_exit
        _
      %p1127 = scmp.lt.s32.totalorder %s13, 1
      %s1128 = scalar_select %p1127, %s13, 1
      %s1129 = smul.addr %s1128, 4
      %s1130 = smul.addr %s1129, 8
      %s1131 = scalar_lea.vmem %s2, %s1130
      // Predicated region
      $region36: #{losses_forward.1} parent=27 // pred_check
        %p1132 = pneg %p78
      $region37: #{losses_forward.1} parent=27 // pred_check_branch
        %1134 = sbr.rel (%p1132) target = $region39
      $region38: #{losses_forward.1} parent=27 // pred_region
        _
      $region39: #{losses_forward.1} parent=27 // pred_fallthru
        _
    $region28: #{losses_forward.1} parent=5 // pred_fallthru
      _
    %p1135 = scmp.le.s32.totalorder 2, %s8
    // Predicated region
    $region40: #{losses_forward.1} parent=5 // pred_check
      %p1136 = pneg %p1135
    $region41: #{losses_forward.1} parent=5 // pred_check_branch
      %1138 = sbr.rel (%p1136) target = $region43
    $region42: #{losses_forward.1} parent=5 // pred_region
      %s1139 = ssub.s32 %s8, 2
      // Predicated region
      $region44: #{losses_forward.1} parent=42 // pred_check
        %p1140 = pneg %p84
      $region45: #{losses_forward.1} parent=42 // pred_check_branch
        %1142 = sbr.rel (%p1140) target = $region47
      $region46: #{losses_forward.1} parent=42 // pred_region
        %p1143 = scmp.lt.s32.totalorder %s14, 1
        %s1144 = scalar_select %p1143, %s14, 1
        %s1145 = smul.addr %s1144, 4
        %s1146 = smul.addr %s1145, 8
        %s1147 = scalar_lea.vmem %s2, %s1146
      $region47: #{losses_forward.1} parent=42 // pred_fallthru
        _
    $region43: #{losses_forward.1} parent=5 // pred_fallthru
      _
  $region6: #{losses_forward.1} parent=0 // loop_footer
    %s12 = sadd.s32 1, %s8
  $region7: #{losses_forward.1} parent=0 // loop_footer_branch
    %7 = sbr.rel target = $region3
  $region8: #{losses_forward.1} parent=0 // loop_exit
    _

</llo_original>
